<compile_context>
chip_gen: v6e
topology: v6e:2x2x1
jax: 0.10.0
libtpu: 0.0.40
codegen_flags: <defaults>
</compile_context>

<pallas_src>
import math

import jax
import jax.numpy as jnp
from jax.experimental import pallas as pl
from jax.experimental.pallas import tpu as pltpu


# ----------------------------- Pallas kernel ------------------------------ #

def linear_kernel(x_ref, w_ref, b_ref, o_ref):
    # o = x @ W^T + b ; W already transposed wrapper-side, bias kept f32.
    o_ref[...] = (
        jnp.dot(x_ref[...], w_ref[...], preferred_element_type=jnp.float32)
        + b_ref[...]
    )


def _round_up(n, m):
    return ((n + m - 1) // m) * m


def _pick_tile(b_sub, sub, max_tile):
    """Row tile: single tile for tiny batches, otherwise >=2 tiles (v7x TCs)
    with waste bounded to < `sub` rows per tile."""
    if b_sub <= max(256, 2 * sub):
        return b_sub
    n_tiles = max(2, pl.cdiv(b_sub, max_tile))
    return _round_up(pl.cdiv(b_sub, n_tiles), sub)


def prepare_params(w, b, *, compute_dtype=jnp.bfloat16):
    """Hoisted (once per param update): transposed compute-dtype weight and
    f32 bias row.  w: (C, K) PyTorch layout, b: (C,)."""
    w_t = jnp.asarray(w).T.astype(compute_dtype)            # (K, C)
    b_row = jnp.asarray(b, jnp.float32).reshape(1, -1)      # (1, C)
    return w_t, b_row


def _linear_pallas(x, w_t, b_row, *, max_tile=2048):
    B, K = x.shape
    Kw, C = w_t.shape
    assert K == Kw and b_row.shape == (1, C)

    compute_dtype = w_t.dtype
    # bf16 needs sublane multiples of 16 (8 for f32).
    sub = 16 if compute_dtype == jnp.bfloat16 else 8

    b_sub = _round_up(B, sub)
    tm = _pick_tile(b_sub, sub, max_tile)
    b_pad = _round_up(b_sub, tm)

    x_p = x.astype(compute_dtype)
    if b_pad != B:
        x_p = jnp.pad(x_p, ((0, b_pad - B), (0, 0)))

    out = pl.pallas_call(
        linear_kernel,
        out_shape=jax.ShapeDtypeStruct((b_pad, C), jnp.float32),
        grid=(b_pad // tm,),
        in_specs=[
            pl.BlockSpec((tm, K), lambda i: (i, 0)),   # x rows per step (true K)
            pl.BlockSpec((K, C), lambda i: (0, 0)),    # weight resident in VMEM
            pl.BlockSpec((1, C), lambda i: (0, 0)),    # bias resident in VMEM
        ],
        out_specs=pl.BlockSpec((tm, C), lambda i: (i, 0)),  # true C, no pad
        compiler_params=pltpu.CompilerParams(
            dimension_semantics=("parallel",),
        ),
    )(x_p, w_t, b_row)

    return out[:B] if b_pad != B else out


def linear_base_forward(x, params, *, min_pallas_batch=1024, max_tile=2048):
    """LinearBase.forward.  x: (B, K) f32; params from prepare_params()."""
    w_t, b_row = params
    if x.shape[0] < min_pallas_batch:
        # Tiny batches: kernel-launch overhead dominates; plain XLA dot wins.
        return jnp.dot(x.astype(w_t.dtype), w_t,
                       preferred_element_type=jnp.float32) + b_row
    return _linear_pallas(x, w_t, b_row, max_tile=max_tile)


# ----------------------------- pure-JAX references ------------------------- #

def reference_forward_f32(x, w, b):
    return x @ w.T + b


def reference_forward_bf16(x, w, b):
    xb = x.astype(jnp.bfloat16).astype(jnp.float32)
    wb = w.T.astype(jnp.bfloat16).astype(jnp.float32)
    return xb @ wb + b


# --------------------------------- main ------------------------------------ #

def init_params(key, *, input_size, num_classes):
    kw, kb = jax.random.split(key)
    s = 1.0 / math.sqrt(input_size)              # PyTorch nn.Linear init scale
    w = jax.random.uniform(kw, (num_classes, input_size), jnp.float32, -s, s)
    b = jax.random.uniform(kb, (num_classes,), jnp.float32, -s, s)
    return w, b


if __name__ == "__main__":
    INPUT_SIZE, NUM_CLASSES = 40, 10             # matches LinearBase defaults
    key = jax.random.PRNGKey(0)
    k_x, k_x2, k_p = jax.random.split(key, 3)

    w, b = init_params(k_p, input_size=INPUT_SIZE, num_classes=NUM_CLASSES)
    params = prepare_params(w, b)

    # Exercise the Pallas path: B=4 (single tile) and B=300 (2 tiles, padded B).
    for batch in (4, 300):
        x = jax.random.normal(jax.random.fold_in(k_x, batch),
                              (batch, INPUT_SIZE), jnp.float32)
        out = linear_base_forward(x, params, min_pallas_batch=0)  # force Pallas
        out = jax.block_until_ready(out)
        assert out.shape == (batch, NUM_CLASSES), out.shape

        ref_bf = reference_forward_bf16(x, w, b)
        ref_f32 = reference_forward_f32(x, w, b)
        assert jnp.allclose(out, ref_bf, atol=1e-3, rtol=1e-3)
        assert jnp.allclose(out, ref_f32, atol=5e-2, rtol=5e-2)

    # Small-batch XLA fast path (default threshold).
    x_small = jax.random.normal(k_x2, (4, INPUT_SIZE), jnp.float32)
    out_fast = jax.block_until_ready(linear_base_forward(x_small, params))
    assert jnp.allclose(out_fast, reference_forward_f32(x_small, w, b),
                        atol=5e-2, rtol=5e-2)

    print("KERNEL_OK")
</pallas_src>

<mosaic_0001>
module attributes {stable_mosaic.version = 11 : i64} {
  func.func @linear_kernel(%arg0: i32, %arg1: memref<16x40xbf16, #tpu.memory_space<vmem>>, %arg2: memref<40x10xbf16, #tpu.memory_space<vmem>>, %arg3: memref<1x10xf32, #tpu.memory_space<vmem>>, %arg4: memref<16x10xf32, #tpu.memory_space<vmem>>) attributes {dimension_semantics = [#tpu.dimension_semantics<parallel>], iteration_bounds = array<i64: 1>, scalar_prefetch = 0 : i64, scratch_operands = 0 : i64, tpu.core_type = #tpu.core_type<tc>, window_params = [{transform_indices = @transform_0, window_bounds = array<i64: 16, 40>}, {pipeline_mode = #tpu.pipeline_mode<synchronous>, transform_indices = @transform_1, window_bounds = array<i64: 40, 10>}, {pipeline_mode = #tpu.pipeline_mode<synchronous>, transform_indices = @transform_2, window_bounds = array<i64: 1, 10>}, {transform_indices = @transform_3, window_bounds = array<i64: 16, 10>}]} {
    %c0 = arith.constant 0 : index
    %c0_0 = arith.constant 0 : index
    %0 = vector.load %arg1[%c0, %c0_0] : memref<16x40xbf16, #tpu.memory_space<vmem>>, vector<16x40xbf16>
    %c0_1 = arith.constant 0 : index
    %c0_2 = arith.constant 0 : index
    %1 = vector.load %arg2[%c0_1, %c0_2] : memref<40x10xbf16, #tpu.memory_space<vmem>>, vector<40x10xbf16>
    %cst = arith.constant dense<0.000000e+00> : vector<16x10xf32>
    %2 = tpu.matmul %0, %1, %cst {dimension_numbers = #tpu.dot_dimension_numbers<[1], [0], [0], [1], [0, 0, 1, 1], [], []>} : vector<16x40xbf16>, vector<40x10xbf16>, vector<16x10xf32> -> vector<16x10xf32>
    %c0_3 = arith.constant 0 : index
    %c0_4 = arith.constant 0 : index
    %3 = vector.load %arg3[%c0_3, %c0_4] : memref<1x10xf32, #tpu.memory_space<vmem>>, vector<1x10xf32>
    %4 = vector.broadcast %3 : vector<1x10xf32> to vector<16x10xf32>
    %5 = arith.addf %2, %4 : vector<16x10xf32>
    %c0_5 = arith.constant 0 : index
    %c0_6 = arith.constant 0 : index
    %6 = vector.load %arg4[%c0_5, %c0_6] : memref<16x10xf32, #tpu.memory_space<vmem>>, vector<16x10xf32>
    tpu.vector_store %arg4[%c0_5, %c0_6], %5 {strides = array<i32>} : memref<16x10xf32, #tpu.memory_space<vmem>>, vector<16x10xf32>,
    return
  }
  func.func @transform_0(%arg0: i32) -> (i32, i32) {
    %c0_i32 = arith.constant 0 : i32
    %c0_i32_0 = arith.constant 0 : i32
    return %arg0, %c0_i32 : i32, i32
  }
  func.func @transform_1(%arg0: i32) -> (i32, i32) {
    %c0_i32 = arith.constant 0 : i32
    %c0_i32_0 = arith.constant 0 : i32
    %c0_i32_1 = arith.constant 0 : i32
    return %c0_i32, %c0_i32_0 : i32, i32
  }
  func.func @transform_2(%arg0: i32) -> (i32, i32) {
    %c0_i32 = arith.constant 0 : i32
    %c0_i32_0 = arith.constant 0 : i32
    %c0_i32_1 = arith.constant 0 : i32
    return %c0_i32, %c0_i32_0 : i32, i32
  }
  func.func @transform_3(%arg0: i32) -> (i32, i32) {
    %c0_i32 = arith.constant 0 : i32
    %c0_i32_0 = arith.constant 0 : i32
    return %arg0, %c0_i32 : i32, i32
  }
}

</mosaic_0001>

<llo_original>
// kernel: tpu_custom_call.1
$region0: #{tpu_custom_call.1}
  #allocation0 [shape = 'u32[]', space=smem, size = 0x4, offset = 0x4, fixed_abs, tag = 'smem constant byte address 0x4 - core index']
  #allocation1 [shape = 'u32[144,128]{1,0:T(1,128)}', space=vmem, size = 0x12000, scoped, tag = 'internal scratch']
  %s0 = inlined_call_operand.vmem [shape: bf16[16,40], index: 0, kind: input, shape index: {}]
  %s1 = inlined_call_operand.vmem [shape: bf16[40,10], index: 1, kind: input, shape index: {}]
  %s2 = inlined_call_operand.vmem [shape: f32[1,10], index: 2, kind: input, shape index: {}]
  %s3 = inlined_call_operand.hbm [shape: f32[16,10], index: 3, kind: output, shape index: {}]
  %s4 = sld [smem:[#allocation0]]
  $region22: #{tpu_custom_call.1} parent=0
    _
  %s6 = ssub.s32 1, %s4
  %s7 = scalar_select 0, %s6, %s4
  $region1: #{tpu_custom_call.1} parent=0
    #allocation2 [shape = 'u8[8192]{0}', space=vmem, size = 0x2000, scoped, tag = 'output window, operand 0, single buffered']
    #allocation3 [shape = 's32[1]{0}', space=sflag, size = 0x4, scoped, tag = 'scoped memory for tpu_custom_call.1']
    %8 = vsyncpa [#allocation3], 0
    // Predicated region
    $region2: #{tpu_custom_call.1} parent=1 // pred_check
      _
    $region3: #{tpu_custom_call.1} parent=1 // pred_check_branch
      %10 = sbr.rel (0) target = $region5
    $region4: #{tpu_custom_call.1} parent=1 // pred_region
      _
    $region5: #{tpu_custom_call.1} parent=1 // pred_fallthru
      _
    // Predicated region
    $region6: #{tpu_custom_call.1} parent=1 // pred_check
      _
    $region7: #{tpu_custom_call.1} parent=1 // pred_check_branch
      %12 = sbr.rel (0) target = $region9
    $region8: #{tpu_custom_call.1} parent=1 // pred_region
      _
    $region9: #{tpu_custom_call.1} parent=1 // pred_fallthru
      _
    // Predicated region
    $region10: #{tpu_custom_call.1} parent=1 // pred_check
      _
    $region11: #{tpu_custom_call.1} parent=1 // pred_check_branch
      %14 = sbr.rel (0) target = $region13
    $region12: #{tpu_custom_call.1} parent=1 // pred_region
      _
    $region13: #{tpu_custom_call.1} parent=1 // pred_fallthru
      _
    %v16 = vld [vmem:[%s0] sm:$0xf]
    %v17 = vld [vmem:[%s0 + $0x4] sm:$0xf]
    %v18 = vld [vmem:[%s1] sm:$0xf]
    %v19 = vld [vmem:[%s1 + $0x4] sm:$0xf]
    %v20 = vld [vmem:[%s1 + $0x8] sm:$0xf]
    %v21 = vld [vmem:[%s1 + $0xc] sm:$0xf]
    %v22 = vld [vmem:[%s1 + $0x10] sm:$0xf]
    %v23 = vld [vmem:[%s2] sm:$0x1]
    %v25 = vlaneseq
    %v26 = vshrl.u32 %v25, 7
    %v27 = vsub.s32 0, %v26
    %v28 = vrot.slane %v23, %v27
    %v32 = vunpack.c.l.b16 %v16
    %v33 = vunpack.c.l.b16 %v17
    %v34 = vpack.c.b16 %v33, %v32
    %v40 = vunpack.c.l.b16 %v18
    %v41 = vunpack.c.l.b16 %v19
    %v42 = vunpack.c.l.b16 %v20
    %v43 = vunpack.c.l.b16 %v21
    %v44 = vunpack.c.l.b16 %v22
    %v45 = vpack.c.b16 %v41, %v40
    %v46 = vpack.c.b16 %v43, %v42
    %v47 = vpack.c.b16 %v44, %v44
    %vm50 = vcmask 326656
    %v52 = vsel %vm50, %v34, 0
    %vm54 = vcmask 1043456
    %v56 = vsel %vm54, %v47, 0
    %58 = vmatprep.subr.bf16.mxu0 0
    %59 = vmatpush1.bf16.msra.mxu0 0
    %60 = vmatprep.subr.bf16.mxu0 0
    %61 = vmatpush1.bf16.msra.mxu0 0
    %62 = vmatprep.subr.bf16.mxu0 0
    %63 = vmatpush1.bf16.msra.mxu0 0
    %64 = vmatprep.subr.bf16.mxu0 0
    %65 = vmatpush1.bf16.msra.mxu0 0
    %66 = vmatprep.subr.bf16.mxu0 0
    %67 = vmatpush1.bf16.msra.mxu0 0
    %68 = vmatprep.subr.bf16.mxu0 0
    %69 = vmatpush1.bf16.msra.mxu0 %v56
    %70 = vmatprep.subr.bf16.mxu0 0
    %71 = vmatpush1.bf16.msra.mxu0 %v46
    %72 = vmatprep.subr.bf16.mxu0 0
    %73 = vmatpush1.bf16.msra.mxu0 %v45
    %74 = vmatprep.subr.bf16.mxu0 0
    %75 = vmatpush2.bf16.msra.mxu0 0
    %76 = vmatprep.subr.bf16.mxu0 0
    %77 = vmatpush2.bf16.msra.mxu0 0
    %78 = vmatprep.subr.bf16.mxu0 0
    %79 = vmatpush2.bf16.msra.mxu0 0
    %80 = vmatprep.subr.bf16.mxu0 0
    %81 = vmatpush2.bf16.msra.mxu0 0
    %82 = vmatprep.subr.bf16.mxu0 0
    %83 = vmatpush2.bf16.msra.mxu0 0
    %84 = vmatprep.subr.bf16.mxu0 0
    %85 = vmatpush2.bf16.msra.mxu0 0
    %86 = vmatprep.subr.bf16.mxu0 0
    %87 = vmatpush2.bf16.msra.mxu0 0
    %88 = vmatprep.subr.bf16.mxu0 0
    %89 = vmatpush2.bf16.msra.mxu0 0
    %90 = vmatprep.mubr.bf16.mxu0 0
    %91 = vmatmul.mubr.bf16.gmra.mxu0 %v52
    %v92 = vpop.f32.mrf.mxu0
    %v93 = vadd.f32 %v28, %v92
    %v94 = vpop.f32.mrf.mxu0
    %v95 = vpop.f32.mrf.mxu0
    %v96 = vadd.f32 %v28, %v95
    %v97 = vpop.f32.mrf.mxu0
    %98 = vdwg.mxu0
    %vm99 = vcmask 80896
    %100 = vst.msk [vmem:[#allocation2] sm:$0xff] %vm99, %v93
    %101 = vst.msk [vmem:[#allocation2 + $0x8] sm:$0xff] %vm99, %v96
    // Predicated region
    $region14: #{tpu_custom_call.1} parent=1 // pred_check
      _
    $region15: #{tpu_custom_call.1} parent=1 // pred_check_branch
      %103 = sbr.rel (0) target = $region17
    $region16: #{tpu_custom_call.1} parent=1 // pred_region
      %s105 = ssub.s32 256, 256
      %106 = vsyncadd [#allocation3], %s105
      %s107 = sshll.u32 [#allocation2], 4
      %s108 = int_to_ptr.vmem [resolvable:$true] %s107
      %113 = dma.vmem_to_hbm [thread:$0]  %s108, 256, %s3, [#allocation3], 128, 128, 8
    $region17: #{tpu_custom_call.1} parent=1 // pred_fallthru
      _
    // Predicated region
    $region18: #{tpu_custom_call.1} parent=1 // pred_check
      _
    $region19: #{tpu_custom_call.1} parent=1 // pred_check_branch
      %115 = sbr.rel (0) target = $region21
    $region20: #{tpu_custom_call.1} parent=1 // pred_region
      %116 = dma.done [#allocation3], 256
    $region21: #{tpu_custom_call.1} parent=1 // pred_fallthru
      _
    %117 = vsyncpa [#allocation3], 1

</llo_original>
